<compile_context>
chip_gen: v6e
topology: v6e:2x2x1
jax: 0.10.0
libtpu: 0.0.40
codegen_flags: <defaults>
</compile_context>

<pallas_src>
import jax
import jax.numpy as jnp
from jax import lax
from jax.experimental import pallas as pl
from jax.experimental.pallas import tpu as pltpu


def _linear_kernel(x_ref, w_ref, b_ref, o_ref):
    # x_ref: (TM, K)   w_ref: (N, K)   b_ref: (1, N)   o_ref: (TM, N)
    # Contract the last dims of both operands (== x @ w.T): feeds the MXU
    # directly, no transposed copy of w inside the kernel.
    acc = lax.dot_general(
        x_ref[...], w_ref[...],
        dimension_numbers=(((1,), (1,)), ((), ())),
        preferred_element_type=jnp.float32,
    )
    o_ref[...] = (acc + b_ref[...]).astype(o_ref.dtype)


def _linear_small(x, weight, bias2d):
    """Gridless path: whole problem resident in VMEM, one DMA in / one out."""
    B = x.shape[0]
    OUT = weight.shape[0]
    return pl.pallas_call(
        _linear_kernel,
        out_shape=jax.ShapeDtypeStruct((B, OUT), x.dtype),
        in_specs=[
            pl.BlockSpec(memory_space=pltpu.MemorySpace.VMEM),
            pl.BlockSpec(memory_space=pltpu.MemorySpace.VMEM),
            pl.BlockSpec(memory_space=pltpu.MemorySpace.VMEM),
        ],
        out_specs=pl.BlockSpec(memory_space=pltpu.MemorySpace.VMEM),
    )(x, weight, bias2d)


def _linear_tiled_dense(x, weight, bias, block_rows, pack):
    """Lane-dense tiled path for large batches.

    `pack` logical rows are packed into one 128-lane dense row:
      x (B, IN)   -> xd (B/pack, pack*IN)        (free contiguous reshape)
      W (OUT, IN) -> W_blk = kron(I_pack, W)     (pack*OUT, pack*IN), block-diag
      y (B, OUT)  <- yd (B/pack, pack*OUT)       (free contiguous reshape back)
    Both streamed input tiles and output tiles are lane-dense (last dim a
    multiple of 128); the kernel is one plain matmul with no in-kernel
    relayout.  Ragged batches are handled by Pallas boundary clipping.
    """
    B, IN = x.shape
    OUT = weight.shape[0]

    xd = x.reshape(B // pack, pack * IN)
    w_blk = jnp.kron(jnp.eye(pack, dtype=weight.dtype), weight)   # (pack*OUT, pack*IN)
    b_blk = jnp.tile(bias, pack).reshape(1, pack * OUT)

    dense_rows = B // pack
    tile_rows = block_rows // pack

    yd = pl.pallas_call(
        _linear_kernel,
        out_shape=jax.ShapeDtypeStruct((dense_rows, pack * OUT), x.dtype),
        grid_spec=pltpu.PrefetchScalarGridSpec(
            num_scalar_prefetch=0,
            grid=(pl.cdiv(dense_rows, tile_rows),),
            in_specs=[
                # x streams HBM->VMEM in large lane-dense tiles.
                pl.BlockSpec((tile_rows, pack * IN), lambda i: (i, 0)),
                # Block-diagonal weight and bias stay resident across the grid.
                pl.BlockSpec((pack * OUT, pack * IN), lambda i: (0, 0)),
                pl.BlockSpec((1, pack * OUT), lambda i: (0, 0)),
            ],
            out_specs=pl.BlockSpec((tile_rows, pack * OUT), lambda i: (i, 0)),
        ),
        compiler_params=pltpu.CompilerParams(
            # Independent row tiles: let v7x megacore shard the batch axis.
            dimension_semantics=("parallel",),
        ),
    )(xd, w_blk, b_blk)
    return yd.reshape(B, OUT)


def _linear_tiled_sparse(x, weight, bias2d, block_rows):
    """Fallback tiled path (lane-sparse last dims) for huge batches whose size
    is not a multiple of the dense packing factor.  Still no pad/slice: the
    ragged final block is handled by Pallas boundary clipping."""
    B, IN = x.shape
    OUT = weight.shape[0]
    return pl.pallas_call(
        _linear_kernel,
        out_shape=jax.ShapeDtypeStruct((B, OUT), x.dtype),
        grid_spec=pltpu.PrefetchScalarGridSpec(
            num_scalar_prefetch=0,
            grid=(pl.cdiv(B, block_rows),),
            in_specs=[
                pl.BlockSpec((block_rows, IN), lambda i: (i, 0)),
                pl.BlockSpec((OUT, IN), lambda i: (0, 0)),
                pl.BlockSpec((1, OUT), lambda i: (0, 0)),
            ],
            out_specs=pl.BlockSpec((block_rows, OUT), lambda i: (i, 0)),
        ),
        compiler_params=pltpu.CompilerParams(dimension_semantics=("parallel",)),
    )(x, weight, bias2d)


# x+y VMEM byte budget below which the gridless single-tile path is used
# (fits every generation's scoped-VMEM default without double buffering).
_SMALL_PATH_BYTES = 8 * 1024 * 1024


def linear_regression_forward(x, weight, bias, block_rows=32768):
    """y = x @ weight.T + bias (PyTorch nn.Linear convention), in Pallas."""
    B, IN = x.shape
    OUT, IN_w = weight.shape
    assert IN == IN_w
    bias2d = bias.reshape(1, OUT)

    itemsize = jnp.dtype(x.dtype).itemsize
    if B * (IN + OUT) * itemsize <= _SMALL_PATH_BYTES:
        return _linear_small(x, weight, bias2d)

    pack = 128 // OUT if 128 % OUT == 0 else 1
    if (pack > 1 and B % pack == 0 and block_rows % pack == 0
            and (block_rows // pack) % 8 == 0):
        # NOTE: the block-diagonal packing multiplies by exact zeros; only for
        # non-finite inputs (inf/nan) could 0*inf leak across rows within one
        # pack-group — irrelevant for finite regression inputs.
        return _linear_tiled_dense(x, weight, bias, block_rows, pack)
    return _linear_tiled_sparse(x, weight, bias2d, block_rows)


if __name__ == "__main__":
    # Module config: LinearRegression(inp_size=32, out_size=8)
    inp_size, out_size = 32, 8
    batch = 8

    key = jax.random.PRNGKey(0)
    kx, kw, kb, kx_big, kx_odd = jax.random.split(key, 5)

    # Deterministic parameter init (mimics nn.Linear's uniform(+-1/sqrt(in)))
    bound = 1.0 / jnp.sqrt(jnp.float32(inp_size))
    weight = jax.random.uniform(
        kw, (out_size, inp_size), dtype=jnp.float32, minval=-bound, maxval=bound
    )
    bias = jax.random.uniform(
        kb, (out_size,), dtype=jnp.float32, minval=-bound, maxval=bound
    )

    # --- small-batch (gridless) path: the module's nominal shapes ---
    x = jax.random.normal(kx, (batch, inp_size), dtype=jnp.float32)
    y = jax.block_until_ready(linear_regression_forward(x, weight, bias))
    y_ref = x @ weight.T + bias
    assert y.shape == (batch, out_size)
    assert jnp.allclose(y, y_ref, atol=1e-5, rtol=1e-5), "small-path mismatch"

    # --- large batch: lane-dense tiled path (grid >= 2, ragged final block) ---
    big_batch = 70000  # > small cutoff, multiple of 16, not a multiple of 32768
    x_big = jax.random.normal(kx_big, (big_batch, inp_size), dtype=jnp.float32)
    y_big = jax.block_until_ready(linear_regression_forward(x_big, weight, bias))
    y_big_ref = x_big @ weight.T + bias
    assert y_big.shape == (big_batch, out_size)
    assert jnp.allclose(y_big, y_big_ref, atol=1e-5, rtol=1e-5), "dense-tiled mismatch"

    # --- large odd batch: lane-sparse fallback (no pad/slice round trips) ---
    odd_batch = 70003  # not a multiple of the packing factor
    x_odd = jax.random.normal(kx_odd, (odd_batch, inp_size), dtype=jnp.float32)
    y_odd = jax.block_until_ready(linear_regression_forward(x_odd, weight, bias))
    y_odd_ref = x_odd @ weight.T + bias
    assert y_odd.shape == (odd_batch, out_size)
    assert jnp.allclose(y_odd, y_odd_ref, atol=1e-5, rtol=1e-5), "sparse-tiled mismatch"

    print("KERNEL_OK")
</pallas_src>

<mosaic_0001>
module attributes {stable_mosaic.version = 11 : i64} {
  func.func @_linear_kernel(%arg0: memref<8x32xf32, #tpu.memory_space<vmem>>, %arg1: memref<8x32xf32, #tpu.memory_space<vmem>>, %arg2: memref<1x8xf32, #tpu.memory_space<vmem>>, %arg3: memref<8x8xf32, #tpu.memory_space<vmem>>) attributes {dimension_semantics = [], scalar_prefetch = 0 : i64, scratch_operands = 0 : i64, tpu.core_type = #tpu.core_type<tc>} {
    %c0 = arith.constant 0 : index
    %c0_0 = arith.constant 0 : index
    %0 = vector.load %arg0[%c0, %c0_0] : memref<8x32xf32, #tpu.memory_space<vmem>>, vector<8x32xf32>
    %c0_1 = arith.constant 0 : index
    %c0_2 = arith.constant 0 : index
    %1 = vector.load %arg1[%c0_1, %c0_2] : memref<8x32xf32, #tpu.memory_space<vmem>>, vector<8x32xf32>
    %cst = arith.constant dense<0.000000e+00> : vector<8x8xf32>
    %2 = tpu.matmul %0, %1, %cst {dimension_numbers = #tpu.dot_dimension_numbers<[1], [1], [0], [0], [0, 0, 1, 0], [], []>} : vector<8x32xf32>, vector<8x32xf32>, vector<8x8xf32> -> vector<8x8xf32>
    %c0_3 = arith.constant 0 : index
    %c0_4 = arith.constant 0 : index
    %3 = vector.load %arg2[%c0_3, %c0_4] : memref<1x8xf32, #tpu.memory_space<vmem>>, vector<1x8xf32>
    %4 = vector.broadcast %3 : vector<1x8xf32> to vector<8x8xf32>
    %5 = arith.addf %2, %4 : vector<8x8xf32>
    %c0_5 = arith.constant 0 : index
    %c0_6 = arith.constant 0 : index
    %6 = vector.load %arg3[%c0_5, %c0_6] : memref<8x8xf32, #tpu.memory_space<vmem>>, vector<8x8xf32>
    tpu.vector_store %arg3[%c0_5, %c0_6], %5 {strides = array<i32>} : memref<8x8xf32, #tpu.memory_space<vmem>>, vector<8x8xf32>,
    return
  }
}

</mosaic_0001>

<llo_original>
// kernel: tpu_custom_call.1
$region0: #{tpu_custom_call.1}
  #allocation0 [shape = 'u32[]', space=smem, size = 0x4, offset = 0x4, fixed_abs, tag = 'smem constant byte address 0x4 - core index']
  #allocation1 [shape = 'u32[144,128]{1,0:T(1,128)}', space=vmem, size = 0x12000, scoped, tag = 'internal scratch']
  %s0 = inlined_call_operand.hbm [shape: f32[8,32], index: 0, kind: input, shape index: {}]
  %s1 = inlined_call_operand.hbm [shape: f32[8,32], index: 1, kind: input, shape index: {}]
  %s2 = inlined_call_operand.vmem [shape: f32[1,8], index: 2, kind: input, shape index: {}]
  %s3 = inlined_call_operand.hbm [shape: f32[8,8], index: 3, kind: output, shape index: {}]
  %s4 = sld [smem:[#allocation0]]
  $region30: #{tpu_custom_call.1} parent=0
    _
  %s6 = ssub.s32 1, %s4
  %s7 = scalar_select 0, %s6, %s4
  $region1: #{tpu_custom_call.1} parent=0
    #allocation2 [shape = 'u8[4096]{0}', space=vmem, size = 0x1000, scoped, tag = 'input window, operand 0, single buffered']
    #allocation3 [shape = 's32[1]{0}', space=sflag, size = 0x4, scoped, tag = 'scoped memory for tpu_custom_call.1']
    #allocation4 [shape = 's32[1]{0}', space=sflag, size = 0x4, scoped, tag = 'scoped memory for tpu_custom_call.1']
    #allocation5 [shape = 'u8[4096]{0}', space=vmem, size = 0x1000, scoped, tag = 'input window, operand 1, single buffered']
    #allocation6 [shape = 's32[1]{0}', space=sflag, size = 0x4, scoped, tag = 'scoped memory for tpu_custom_call.1']
    #allocation7 [shape = 'u8[4096]{0}', space=vmem, size = 0x1000, scoped, tag = 'output window, operand 0, single buffered']
    %8 = vsyncpa [#allocation3], 0
    %9 = vsyncpa [#allocation6], 0
    %10 = vsyncpa [#allocation4], 0
    // Predicated region
    $region2: #{tpu_custom_call.1} parent=1 // pred_check
      _
    $region3: #{tpu_custom_call.1} parent=1 // pred_check_branch
      %12 = sbr.rel (0) target = $region5
    $region4: #{tpu_custom_call.1} parent=1 // pred_region
      %s14 = ssub.s32 128, 128
      %15 = vsyncadd [#allocation3], %s14
      %s17 = sshll.u32 [#allocation2], 4
      %s18 = int_to_ptr.vmem [resolvable:$true] %s17
      %20 = dma.hbm_to_vmem [thread:$0]  %s0, 128, %s18, [#allocation3]
    $region5: #{tpu_custom_call.1} parent=1 // pred_fallthru
      _
    // Predicated region
    $region6: #{tpu_custom_call.1} parent=1 // pred_check
      _
    $region7: #{tpu_custom_call.1} parent=1 // pred_check_branch
      %22 = sbr.rel (0) target = $region9
    $region8: #{tpu_custom_call.1} parent=1 // pred_region
      %s24 = ssub.s32 128, 128
      %25 = vsyncadd [#allocation6], %s24
      %s27 = sshll.u32 [#allocation5], 4
      %s28 = int_to_ptr.vmem [resolvable:$true] %s27
      %30 = dma.hbm_to_vmem [thread:$0]  %s1, 128, %s28, [#allocation6]
    $region9: #{tpu_custom_call.1} parent=1 // pred_fallthru
      _
    // Predicated region
    $region10: #{tpu_custom_call.1} parent=1 // pred_check
      _
    $region11: #{tpu_custom_call.1} parent=1 // pred_check_branch
      %32 = sbr.rel (0) target = $region13
    $region12: #{tpu_custom_call.1} parent=1 // pred_region
      _
    $region13: #{tpu_custom_call.1} parent=1 // pred_fallthru
      _
    // Predicated region
    $region14: #{tpu_custom_call.1} parent=1 // pred_check
      _
    $region15: #{tpu_custom_call.1} parent=1 // pred_check_branch
      %34 = sbr.rel (0) target = $region17
    $region16: #{tpu_custom_call.1} parent=1 // pred_region
      %35 = dma.done [#allocation3], 128
    $region17: #{tpu_custom_call.1} parent=1 // pred_fallthru
      _
    // Predicated region
    $region18: #{tpu_custom_call.1} parent=1 // pred_check
      _
    $region19: #{tpu_custom_call.1} parent=1 // pred_check_branch
      %37 = sbr.rel (0) target = $region21
    $region20: #{tpu_custom_call.1} parent=1 // pred_region
      %38 = dma.done [#allocation6], 128
    $region21: #{tpu_custom_call.1} parent=1 // pred_fallthru
      _
    %v39 = vld [vmem:[#allocation2] sm:$0xff]
    %v40 = vld [vmem:[#allocation5] sm:$0xff]
    %v41 = vld [vmem:[%s2] sm:$0x1]
    %v43 = vlaneseq
    %v44 = vshrl.u32 %v43, 7
    %v45 = vsub.s32 0, %v44
    %v46 = vrot.slane %v41, %v45
    %vm48 = vcmask 261120
    %v50 = vsel %vm48, %v39, 0
    %v53 = vsel %vm48, %v40, 0
    %55 = vmatprep.subr.mxu0 0.0
    %56 = vmatpush1.xpose.msra.mxu0 0.0
    %57 = vmatprep.subr.mxu0 0.0
    %58 = vmatpush1.xpose.msra.mxu0 0.0
    %59 = vmatprep.subr.mxu0 0.0
    %60 = vmatpush1.xpose.msra.mxu0 0.0
    %61 = vmatprep.subr.mxu0 0.0
    %62 = vmatpush1.xpose.msra.mxu0 0.0
    %63 = vmatprep.subr.mxu0 0.0
    %64 = vmatpush1.xpose.msra.mxu0 0.0
    %65 = vmatprep.subr.mxu0 0.0
    %66 = vmatpush1.xpose.msra.mxu0 0.0
    %67 = vmatprep.subr.mxu0 0.0
    %68 = vmatpush1.xpose.msra.mxu0 0.0
    %69 = vmatprep.subr.mxu0 0.0
    %70 = vmatpush1.xpose.msra.mxu0 0.0
    %71 = vmatprep.subr.mxu0 0.0
    %72 = vmatpush1.xpose.msra.mxu0 0.0
    %73 = vmatprep.subr.mxu0 0.0
    %74 = vmatpush1.xpose.msra.mxu0 0.0
    %75 = vmatprep.subr.mxu0 0.0
    %76 = vmatpush1.xpose.msra.mxu0 0.0
    %77 = vmatprep.subr.mxu0 0.0
    %78 = vmatpush1.xpose.msra.mxu0 0.0
    %79 = vmatprep.subr.mxu0 0.0
    %80 = vmatpush1.xpose.msra.mxu0 0.0
    %81 = vmatprep.subr.mxu0 0.0
    %82 = vmatpush1.xpose.msra.mxu0 0.0
    %83 = vmatprep.subr.mxu0 0.0
    %84 = vmatpush1.xpose.msra.mxu0 0.0
    %85 = vmatprep.subr.mxu0 0.0
    %86 = vmatpush1.xpose.msra.mxu0 %v53
    %87 = vmatprep.subr.mxu0 0.0
    %88 = vmatpush2.xpose.msra.mxu0 0.0
    %89 = vmatprep.subr.mxu0 0.0
    %90 = vmatpush2.xpose.msra.mxu0 0.0
    %91 = vmatprep.subr.mxu0 0.0
    %92 = vmatpush2.xpose.msra.mxu0 0.0
    %93 = vmatprep.subr.mxu0 0.0
    %94 = vmatpush2.xpose.msra.mxu0 0.0
    %95 = vmatprep.subr.mxu0 0.0
    %96 = vmatpush2.xpose.msra.mxu0 0.0
    %97 = vmatprep.subr.mxu0 0.0
    %98 = vmatpush2.xpose.msra.mxu0 0.0
    %99 = vmatprep.subr.mxu0 0.0
    %100 = vmatpush2.xpose.msra.mxu0 0.0
    %101 = vmatprep.subr.mxu0 0.0
    %102 = vmatpush2.xpose.msra.mxu0 0.0
    %103 = vmatprep.subr.mxu0 0.0
    %104 = vmatpush2.xpose.msra.mxu0 0.0
    %105 = vmatprep.subr.mxu0 0.0
    %106 = vmatpush2.xpose.msra.mxu0 0.0
    %107 = vmatprep.subr.mxu0 0.0
    %108 = vmatpush2.xpose.msra.mxu0 0.0
    %109 = vmatprep.subr.mxu0 0.0
    %110 = vmatpush2.xpose.msra.mxu0 0.0
    %111 = vmatprep.subr.mxu0 0.0
    %112 = vmatpush2.xpose.msra.mxu0 0.0
    %113 = vmatprep.subr.mxu0 0.0
    %114 = vmatpush2.xpose.msra.mxu0 0.0
    %115 = vmatprep.subr.mxu0 0.0
    %116 = vmatpush2.xpose.msra.mxu0 0.0
    %117 = vmatprep.subr.mxu0 0.0
    %118 = vmatpush2.xpose.msra.mxu0 0.0
    %119 = vmatprep.mubr.f32.mxu0 0.0
    %120 = vmatmul.mubr.f32.gmra.mxu0 %v50
    %v121 = vpop.f32.mrf.mxu0
    %v122 = vadd.f32 %v46, %v121
    %v123 = vpop.f32.mrf.mxu0
    %124 = vdwg.mxu0
    %vm125 = vcmask 64512
    %126 = vst.msk [vmem:[#allocation7] sm:$0xff] %vm125, %v122
    // Predicated region
    $region22: #{tpu_custom_call.1} parent=1 // pred_check
      _
    $region23: #{tpu_custom_call.1} parent=1 // pred_check_branch
      %128 = sbr.rel (0) target = $region25
    $region24: #{tpu_custom_call.1} parent=1 // pred_region
      %s130 = ssub.s32 128, 128
      %131 = vsyncadd [#allocation4], %s130
      %s133 = sshll.u32 [#allocation7], 4
      %s134 = int_to_ptr.vmem [resolvable:$true] %s133
      %136 = dma.vmem_to_hbm [thread:$0]  %s134, 128, %s3, [#allocation4]
    $region25: #{tpu_custom_call.1} parent=1 // pred_fallthru
      _
    // Predicated region
    $region26: #{tpu_custom_call.1} parent=1 // pred_check
      _
    $region27: #{tpu_custom_call.1} parent=1 // pred_check_branch
      %138 = sbr.rel (0) target = $region29
    $region28: #{tpu_custom_call.1} parent=1 // pred_region
      %139 = dma.done [#allocation4], 128
    $region29: #{tpu_custom_call.1} parent=1 // pred_fallthru
      _
    %140 = vsyncpa [#allocation3], 1
    %141 = vsyncpa [#allocation6], 1
    %142 = vsyncpa [#allocation4], 1

</llo_original>
